<compile_context>
chip_gen: v7x
topology: tpu7x:2x2x1
jax: 0.10.0
libtpu: 0.0.40
codegen_flags: <defaults>
</compile_context>

<pallas_src>
import functools

import jax
import jax.numpy as jnp
from jax.experimental import pallas as pl
from jax.experimental.pallas import tpu as pltpu


def _cdiv(a, b):
    return -(-a // b)


def _vmem_capacity_bytes():
    """Physical VMEM of the current TPU generation (fallback: 64 MiB)."""
    try:
        info = pltpu.get_tpu_info()
        for attr in ("vmem_capacity_bytes", "vmem_size_bytes", "vmem_bytes"):
            v = getattr(info, attr, None)
            if v:
                return int(v)
    except Exception:
        pass
    return 64 * 1024 * 1024


def _budgets():
    """(per-block VMEM budget, scoped vmem_limit_bytes), generation aware."""
    phys = _vmem_capacity_bytes()
    if phys <= 64 * 1024 * 1024:                 # v7x-class: 64 MiB / TC
        return 18 * 1024 * 1024, 44 * 1024 * 1024
    return 28 * 1024 * 1024, 64 * 1024 * 1024    # v5e / v6e: 128 MiB physical


def _pick_batch_block(batch, per_row_bytes, itemsize, budget):
    """Rows per block: as large as fits the budget; split >=2 ways if possible."""
    granule = {4: 8, 2: 16, 1: 32}.get(itemsize, 8)
    bb = max(budget // max(per_row_bytes, 1), 1)
    if bb < batch:
        bb = max(granule, (bb // granule) * granule)
        return min(bb, batch)
    if batch >= 2 * granule:
        # Whole batch fits; still split >=2 ways so both v7x TensorCores /
        # megacore get work.
        return min(_cdiv(_cdiv(batch, 2), granule) * granule, batch)
    return batch


def _moving_avg_kernel(x_ref, o_ref, *scratch, kernel_size, n_ch, pad, has_acc):
    """Windowed mean along the flattened (time, channel) lane axis.

    x_ref  : (Bb, L*C)   unpadded input block (time-major, channel-minor)
    o_ref  : (Bb, n1*C)  stride-1 moving averages
    scratch:
      xp_ref     (Bb, Lp*C) f32 : in-kernel replicate-padded staging buffer
      [acc_ref]  (Bb, n1*C) f32 : accumulator (only when o_ref is not f32)
      [lvl 0..1] f32 ping-pong buffers for the O(log k) doubling tree
    """
    k, C = kernel_size, n_ch
    in_w = x_ref.shape[1]                  # L * C
    out_w = o_ref.shape[1]                 # n1 * C
    xp_ref = scratch[0]
    acc_ref = scratch[1] if has_acc else o_ref
    lvls = scratch[2:] if has_acc else scratch[1:]
    Lp = xp_ref.shape[1] // C
    pw = pad * C

    # ---- stage the replicate-padded row into VMEM (single HBM read of x) ----
    xp_ref[:, pl.ds(pw, in_w)] = x_ref[...].astype(jnp.float32)
    if pad > 0:
        x0 = x_ref[:, pl.ds(0, C)].astype(jnp.float32)
        xL = x_ref[:, pl.ds(in_w - C, C)].astype(jnp.float32)
        for j in range(pad):                       # static, tiny (pad ~ k/2)
            xp_ref[:, pl.ds(j * C, C)] = x0
            xp_ref[:, pl.ds(pw + in_w + j * C, C)] = xL

    # ---- k-tap window sums via an O(log k) doubling tree in f32 scratch ----
    M = 1 << (k.bit_length() - 1)          # highest power of two <= k
    inv_k = 1.0 / k
    state = {"empty": True}

    def accum(term):                       # accumulate into the f32 ref
        if state["empty"]:
            acc_ref[...] = term
            state["empty"] = False
        else:
            acc_ref[...] += term

    def finish(term):                      # fuse last term + 1/k scale + cast
        if state["empty"]:
            res = term * inv_k
        else:
            res = (acc_ref[...] + term) * inv_k
        o_ref[...] = res.astype(o_ref.dtype)

    pos = 1 if (k & 1) else 0              # time offset of the next chunk

    if M == 2:                             # k in {2, 3}: no stored levels
        top = (xp_ref[:, pl.ds(pos * C, out_w)]
               + xp_ref[:, pl.ds((pos + 1) * C, out_w)])
    else:
        # Level 2 from the padded input: S2[t] = xp[t] + xp[t+1].
        v = (Lp - 1) * C
        lvls[0][:, pl.ds(0, v)] = (xp_ref[:, pl.ds(0, v)]
                                   + xp_ref[:, pl.ds(C, v)])
        cur, m = 0, 2
        top = None
        while m <= M // 2:
            if k & m:                      # bit-m term of the decomposition
                accum(lvls[cur][:, pl.ds(pos * C, out_w)])
                pos += m
            if m < M // 2:                 # build level 2m (ping-pong buffers)
                nxt = 1 - cur
                v = (Lp - 2 * m + 1) * C
                lvls[nxt][:, pl.ds(0, v)] = (lvls[cur][:, pl.ds(0, v)]
                                             + lvls[cur][:, pl.ds(m * C, v)])
                cur = nxt
            else:
                # Top bit M expanded into two level-(M/2) terms: level M is
                # never materialized (one full-width scratch pass saved).
                top = (lvls[cur][:, pl.ds(pos * C, out_w)]
                       + lvls[cur][:, pl.ds((pos + m) * C, out_w)])
            m *= 2

    if k & 1:
        accum(top)
        finish(xp_ref[:, pl.ds(0, out_w)])     # single tap fused with 1/k scale
    else:
        finish(top)


@functools.partial(jax.jit, static_argnames=("kernel_size", "stride"))
def moving_avg(x, kernel_size, stride=1):
    """Pallas equivalent of moving_avg(kernel_size, stride).forward(x)."""
    B, L, C = x.shape
    k = int(kernel_size)
    stride = int(stride)
    pad = (k - 1) // 2

    if k == 1:                              # AvgPool1d(1, stride) == subsample
        return x[:, ::stride, :]

    Lp = L + 2 * pad
    n1 = Lp - k + 1                         # stride-1 output length
    if n1 < 1:
        raise ValueError(
            f"kernel_size={k} too large for padded sequence length {Lp}")

    in_w, out_w, xp_w = L * C, n1 * C, Lp * C
    has_acc = x.dtype != jnp.float32        # f32 output accumulates in o_ref

    M = 1 << (k.bit_length() - 1)
    n_lvl = min(max(M.bit_length() - 2, 0), 2)   # 0 (k<=3), 1 (k<=7), else 2
    lvl_ws = []
    if n_lvl >= 1:
        lvl_ws.append((Lp - 1) * C)         # holds levels 2, 8, 32, ...
    if n_lvl >= 2:
        lvl_ws.append((Lp - 3) * C)         # holds levels 4, 16, ...

    itemsize = x.dtype.itemsize
    budget, vmem_limit = _budgets()
    per_row = (2 * (in_w + out_w) * itemsize            # double-buffered i/o
               + (xp_w + sum(lvl_ws)
                  + (out_w if has_acc else 0)           # f32 accumulator
                  + 2 * out_w) * 4)                     # compiler temporaries
    bb = _pick_batch_block(B, per_row, itemsize, budget)
    grid = (_cdiv(B, bb),)

    scratch = [pltpu.VMEM((bb, xp_w), jnp.float32)]
    if has_acc:
        scratch.append(pltpu.VMEM((bb, out_w), jnp.float32))
    for w in lvl_ws:
        scratch.append(pltpu.VMEM((bb, w), jnp.float32))

    kernel = functools.partial(_moving_avg_kernel, kernel_size=k, n_ch=C,
                               pad=pad, has_acc=has_acc)

    xf = x.reshape(B, in_w)                 # free view: row-major, C fastest
    out_flat = pl.pallas_call(
        kernel,
        out_shape=jax.ShapeDtypeStruct((B, out_w), x.dtype),
        grid=grid,
        in_specs=[pl.BlockSpec((bb, in_w), lambda r: (r, 0))],
        out_specs=pl.BlockSpec((bb, out_w), lambda r: (r, 0)),
        scratch_shapes=scratch,
        compiler_params=pltpu.CompilerParams(
            dimension_semantics=("parallel",),
            vmem_limit_bytes=vmem_limit,
        ),
    )(xf)

    out = out_flat.reshape(B, n1, C)
    if stride > 1:
        # TODO(synk): stride>1 is dead for DLinear (stride=1); computing only
        # every stride-th window in-kernel would avoid the wasted stores.
        out = out[:, ::stride, :]           # (B, Lo, C)
    return out


def _reference(x, kernel_size, stride):
    """Pure-JAX reference mirroring the PyTorch forward exactly."""
    pad = (kernel_size - 1) // 2
    if pad > 0:
        front = jnp.repeat(x[:, :1, :], pad, axis=1)
        end = jnp.repeat(x[:, -1:, :], pad, axis=1)
        xp = jnp.concatenate([front, x, end], axis=1)
    else:
        xp = x
    Lp = xp.shape[1]
    Lo = (Lp - kernel_size) // stride + 1
    windows = [
        xp[:, t * stride: t * stride + kernel_size, :].mean(axis=1)
        for t in range(Lo)
    ]
    return jnp.stack(windows, axis=1)       # (B, Lo, C)


if __name__ == "__main__":
    key = jax.random.PRNGKey(0)
    B, L, C = 2, 16, 8
    x = jax.random.normal(key, (B, L, C), dtype=jnp.float32)

    # Typical DLinear config: kernel_size=25, stride=1 (no learnable params).
    out = jax.block_until_ready(moving_avg(x, kernel_size=25, stride=1))
    ref = _reference(x, 25, 1)
    assert out.shape == ref.shape, (out.shape, ref.shape)
    assert jnp.allclose(out, ref, atol=1e-5, rtol=1e-4), "mismatch (k=25,s=1)"

    # Even kernel + stride>1 subsample path.
    out2 = jax.block_until_ready(moving_avg(x, kernel_size=4, stride=2))
    ref2 = _reference(x, 4, 2)
    assert out2.shape == ref2.shape, (out2.shape, ref2.shape)
    assert jnp.allclose(out2, ref2, atol=1e-5, rtol=1e-4), "mismatch (k=4,s=2)"

    # bf16 input exercises the explicit f32 accumulator path.
    xb = x.astype(jnp.bfloat16)
    out3 = jax.block_until_ready(moving_avg(xb, kernel_size=25, stride=1))
    ref3 = _reference(xb.astype(jnp.float32), 25, 1)
    assert out3.shape == ref3.shape, (out3.shape, ref3.shape)
    assert jnp.allclose(out3.astype(jnp.float32), ref3, atol=3e-2, rtol=3e-2), \
        "mismatch (bf16,k=25,s=1)"

    print("KERNEL_OK")
</pallas_src>

<mosaic_0001>
module attributes {stable_mosaic.version = 11 : i64} {
  func.func @_moving_avg_kernel(%arg0: i32, %arg1: memref<2x128xf32, #tpu.memory_space<vmem>>, %arg2: memref<2x128xf32, #tpu.memory_space<vmem>>, %arg3: memref<2x320xf32, #tpu.memory_space<vmem>>, %arg4: memref<2x312xf32, #tpu.memory_space<vmem>>, %arg5: memref<2x296xf32, #tpu.memory_space<vmem>>) attributes {dimension_semantics = [#tpu.dimension_semantics<parallel>], iteration_bounds = array<i64: 1>, scalar_prefetch = 0 : i64, scratch_operands = 3 : i64, tpu.core_type = #tpu.core_type<tc>, window_params = [{transform_indices = @transform_0, window_bounds = array<i64: 2, 128>}, {transform_indices = @transform_1, window_bounds = array<i64: 2, 128>}]} {
    %c0 = arith.constant 0 : index
    %c0_0 = arith.constant 0 : index
    %0 = vector.load %arg1[%c0, %c0_0] : memref<2x128xf32, #tpu.memory_space<vmem>>, vector<2x128xf32>
    %c0_1 = arith.constant 0 : index
    %c96 = arith.constant 96 : index
    %1 = vector.load %arg3[%c0_1, %c96] : memref<2x320xf32, #tpu.memory_space<vmem>>, vector<2x128xf32>
    tpu.vector_store %arg3[%c0_1, %c96], %0 {strides = array<i32>} : memref<2x320xf32, #tpu.memory_space<vmem>>, vector<2x128xf32>,
    %c0_2 = arith.constant 0 : index
    %c0_3 = arith.constant 0 : index
    %2 = vector.load %arg1[%c0_2, %c0_3] : memref<2x128xf32, #tpu.memory_space<vmem>>, vector<2x8xf32>
    %c0_4 = arith.constant 0 : index
    %c120 = arith.constant 120 : index
    %3 = vector.load %arg1[%c0_4, %c120] : memref<2x128xf32, #tpu.memory_space<vmem>>, vector<2x8xf32>
    %c0_5 = arith.constant 0 : index
    %c0_6 = arith.constant 0 : index
    %4 = vector.load %arg3[%c0_5, %c0_6] : memref<2x320xf32, #tpu.memory_space<vmem>>, vector<2x8xf32>
    tpu.vector_store %arg3[%c0_5, %c0_6], %2 {strides = array<i32>} : memref<2x320xf32, #tpu.memory_space<vmem>>, vector<2x8xf32>,
    %c0_7 = arith.constant 0 : index
    %c224 = arith.constant 224 : index
    %5 = vector.load %arg3[%c0_7, %c224] : memref<2x320xf32, #tpu.memory_space<vmem>>, vector<2x8xf32>
    tpu.vector_store %arg3[%c0_7, %c224], %3 {strides = array<i32>} : memref<2x320xf32, #tpu.memory_space<vmem>>, vector<2x8xf32>,
    %c0_8 = arith.constant 0 : index
    %c8 = arith.constant 8 : index
    %6 = vector.load %arg3[%c0_8, %c8] : memref<2x320xf32, #tpu.memory_space<vmem>>, vector<2x8xf32>
    tpu.vector_store %arg3[%c0_8, %c8], %2 {strides = array<i32>} : memref<2x320xf32, #tpu.memory_space<vmem>>, vector<2x8xf32>,
    %c0_9 = arith.constant 0 : index
    %c232 = arith.constant 232 : index
    %7 = vector.load %arg3[%c0_9, %c232] : memref<2x320xf32, #tpu.memory_space<vmem>>, vector<2x8xf32>
    tpu.vector_store %arg3[%c0_9, %c232], %3 {strides = array<i32>} : memref<2x320xf32, #tpu.memory_space<vmem>>, vector<2x8xf32>,
    %c0_10 = arith.constant 0 : index
    %c16 = arith.constant 16 : index
    %8 = vector.load %arg3[%c0_10, %c16] : memref<2x320xf32, #tpu.memory_space<vmem>>, vector<2x8xf32>
    tpu.vector_store %arg3[%c0_10, %c16], %2 {strides = array<i32>} : memref<2x320xf32, #tpu.memory_space<vmem>>, vector<2x8xf32>,
    %c0_11 = arith.constant 0 : index
    %c240 = arith.constant 240 : index
    %9 = vector.load %arg3[%c0_11, %c240] : memref<2x320xf32, #tpu.memory_space<vmem>>, vector<2x8xf32>
    tpu.vector_store %arg3[%c0_11, %c240], %3 {strides = array<i32>} : memref<2x320xf32, #tpu.memory_space<vmem>>, vector<2x8xf32>,
    %c0_12 = arith.constant 0 : index
    %c24 = arith.constant 24 : index
    %10 = vector.load %arg3[%c0_12, %c24] : memref<2x320xf32, #tpu.memory_space<vmem>>, vector<2x8xf32>
    tpu.vector_store %arg3[%c0_12, %c24], %2 {strides = array<i32>} : memref<2x320xf32, #tpu.memory_space<vmem>>, vector<2x8xf32>,
    %c0_13 = arith.constant 0 : index
    %c248 = arith.constant 248 : index
    %11 = vector.load %arg3[%c0_13, %c248] : memref<2x320xf32, #tpu.memory_space<vmem>>, vector<2x8xf32>
    tpu.vector_store %arg3[%c0_13, %c248], %3 {strides = array<i32>} : memref<2x320xf32, #tpu.memory_space<vmem>>, vector<2x8xf32>,
    %c0_14 = arith.constant 0 : index
    %c32 = arith.constant 32 : index
    %12 = vector.load %arg3[%c0_14, %c32] : memref<2x320xf32, #tpu.memory_space<vmem>>, vector<2x8xf32>
    tpu.vector_store %arg3[%c0_14, %c32], %2 {strides = array<i32>} : memref<2x320xf32, #tpu.memory_space<vmem>>, vector<2x8xf32>,
    %c0_15 = arith.constant 0 : index
    %c256 = arith.constant 256 : index
    %13 = vector.load %arg3[%c0_15, %c256] : memref<2x320xf32, #tpu.memory_space<vmem>>, vector<2x8xf32>
    tpu.vector_store %arg3[%c0_15, %c256], %3 {strides = array<i32>} : memref<2x320xf32, #tpu.memory_space<vmem>>, vector<2x8xf32>,
    %c0_16 = arith.constant 0 : index
    %c40 = arith.constant 40 : index
    %14 = vector.load %arg3[%c0_16, %c40] : memref<2x320xf32, #tpu.memory_space<vmem>>, vector<2x8xf32>
    tpu.vector_store %arg3[%c0_16, %c40], %2 {strides = array<i32>} : memref<2x320xf32, #tpu.memory_space<vmem>>, vector<2x8xf32>,
    %c0_17 = arith.constant 0 : index
    %c264 = arith.constant 264 : index
    %15 = vector.load %arg3[%c0_17, %c264] : memref<2x320xf32, #tpu.memory_space<vmem>>, vector<2x8xf32>
    tpu.vector_store %arg3[%c0_17, %c264], %3 {strides = array<i32>} : memref<2x320xf32, #tpu.memory_space<vmem>>, vector<2x8xf32>,
    %c0_18 = arith.constant 0 : index
    %c48 = arith.constant 48 : index
    %16 = vector.load %arg3[%c0_18, %c48] : memref<2x320xf32, #tpu.memory_space<vmem>>, vector<2x8xf32>
    tpu.vector_store %arg3[%c0_18, %c48], %2 {strides = array<i32>} : memref<2x320xf32, #tpu.memory_space<vmem>>, vector<2x8xf32>,
    %c0_19 = arith.constant 0 : index
    %c272 = arith.constant 272 : index
    %17 = vector.load %arg3[%c0_19, %c272] : memref<2x320xf32, #tpu.memory_space<vmem>>, vector<2x8xf32>
    tpu.vector_store %arg3[%c0_19, %c272], %3 {strides = array<i32>} : memref<2x320xf32, #tpu.memory_space<vmem>>, vector<2x8xf32>,
    %c0_20 = arith.constant 0 : index
    %c56 = arith.constant 56 : index
    %18 = vector.load %arg3[%c0_20, %c56] : memref<2x320xf32, #tpu.memory_space<vmem>>, vector<2x8xf32>
    tpu.vector_store %arg3[%c0_20, %c56], %2 {strides = array<i32>} : memref<2x320xf32, #tpu.memory_space<vmem>>, vector<2x8xf32>,
    %c0_21 = arith.constant 0 : index
    %c280 = arith.constant 280 : index
    %19 = vector.load %arg3[%c0_21, %c280] : memref<2x320xf32, #tpu.memory_space<vmem>>, vector<2x8xf32>
    tpu.vector_store %arg3[%c0_21, %c280], %3 {strides = array<i32>} : memref<2x320xf32, #tpu.memory_space<vmem>>, vector<2x8xf32>,
    %c0_22 = arith.constant 0 : index
    %c64 = arith.constant 64 : index
    %20 = vector.load %arg3[%c0_22, %c64] : memref<2x320xf32, #tpu.memory_space<vmem>>, vector<2x8xf32>
    tpu.vector_store %arg3[%c0_22, %c64], %2 {strides = array<i32>} : memref<2x320xf32, #tpu.memory_space<vmem>>, vector<2x8xf32>,
    %c0_23 = arith.constant 0 : index
    %c288 = arith.constant 288 : index
    %21 = vector.load %arg3[%c0_23, %c288] : memref<2x320xf32, #tpu.memory_space<vmem>>, vector<2x8xf32>
    tpu.vector_store %arg3[%c0_23, %c288], %3 {strides = array<i32>} : memref<2x320xf32, #tpu.memory_space<vmem>>, vector<2x8xf32>,
    %c0_24 = arith.constant 0 : index
    %c72 = arith.constant 72 : index
    %22 = vector.load %arg3[%c0_24, %c72] : memref<2x320xf32, #tpu.memory_space<vmem>>, vector<2x8xf32>
    tpu.vector_store %arg3[%c0_24, %c72], %2 {strides = array<i32>} : memref<2x320xf32, #tpu.memory_space<vmem>>, vector<2x8xf32>,
    %c0_25 = arith.constant 0 : index
    %c296 = arith.constant 296 : index
    %23 = vector.load %arg3[%c0_25, %c296] : memref<2x320xf32, #tpu.memory_space<vmem>>, vector<2x8xf32>
    tpu.vector_store %arg3[%c0_25, %c296], %3 {strides = array<i32>} : memref<2x320xf32, #tpu.memory_space<vmem>>, vector<2x8xf32>,
    %c0_26 = arith.constant 0 : index
    %c80 = arith.constant 80 : index
    %24 = vector.load %arg3[%c0_26, %c80] : memref<2x320xf32, #tpu.memory_space<vmem>>, vector<2x8xf32>
    tpu.vector_store %arg3[%c0_26, %c80], %2 {strides = array<i32>} : memref<2x320xf32, #tpu.memory_space<vmem>>, vector<2x8xf32>,
    %c0_27 = arith.constant 0 : index
    %c304 = arith.constant 304 : index
    %25 = vector.load %arg3[%c0_27, %c304] : memref<2x320xf32, #tpu.memory_space<vmem>>, vector<2x8xf32>
    tpu.vector_store %arg3[%c0_27, %c304], %3 {strides = array<i32>} : memref<2x320xf32, #tpu.memory_space<vmem>>, vector<2x8xf32>,
    %c0_28 = arith.constant 0 : index
    %c88 = arith.constant 88 : index
    %26 = vector.load %arg3[%c0_28, %c88] : memref<2x320xf32, #tpu.memory_space<vmem>>, vector<2x8xf32>
    tpu.vector_store %arg3[%c0_28, %c88], %2 {strides = array<i32>} : memref<2x320xf32, #tpu.memory_space<vmem>>, vector<2x8xf32>,
    %c0_29 = arith.constant 0 : index
    %c312 = arith.constant 312 : index
    %27 = vector.load %arg3[%c0_29, %c312] : memref<2x320xf32, #tpu.memory_space<vmem>>, vector<2x8xf32>
    tpu.vector_store %arg3[%c0_29, %c312], %3 {strides = array<i32>} : memref<2x320xf32, #tpu.memory_space<vmem>>, vector<2x8xf32>,
    %c0_30 = arith.constant 0 : index
    %c0_31 = arith.constant 0 : index
    %28 = vector.load %arg3[%c0_30, %c0_31] : memref<2x320xf32, #tpu.memory_space<vmem>>, vector<2x312xf32>
    %c0_32 = arith.constant 0 : index
    %c8_33 = arith.constant 8 : index
    %29 = vector.load %arg3[%c0_32, %c8_33] : memref<2x320xf32, #tpu.memory_space<vmem>>, vector<2x312xf32>
    %30 = arith.addf %28, %29 : vector<2x312xf32>
    %c0_34 = arith.constant 0 : index
    %c0_35 = arith.constant 0 : index
    %31 = vector.load %arg4[%c0_34, %c0_35] : memref<2x312xf32, #tpu.memory_space<vmem>>, vector<2x312xf32>
    tpu.vector_store %arg4[%c0_34, %c0_35], %30 {strides = array<i32>} : memref<2x312xf32, #tpu.memory_space<vmem>>, vector<2x312xf32>,
    %c0_36 = arith.constant 0 : index
    %c0_37 = arith.constant 0 : index
    %32 = vector.load %arg4[%c0_36, %c0_37] : memref<2x312xf32, #tpu.memory_space<vmem>>, vector<2x296xf32>
    %c0_38 = arith.constant 0 : index
    %c16_39 = arith.constant 16 : index
    %33 = vector.load %arg4[%c0_38, %c16_39] : memref<2x312xf32, #tpu.memory_space<vmem>>, vector<2x296xf32>
    %34 = arith.addf %32, %33 : vector<2x296xf32>
    %c0_40 = arith.constant 0 : index
    %c0_41 = arith.constant 0 : index
    %35 = vector.load %arg5[%c0_40, %c0_41] : memref<2x296xf32, #tpu.memory_space<vmem>>, vector<2x296xf32>
    tpu.vector_store %arg5[%c0_40, %c0_41], %34 {strides = array<i32>} : memref<2x296xf32, #tpu.memory_space<vmem>>, vector<2x296xf32>,
    %c0_42 = arith.constant 0 : index
    %c0_43 = arith.constant 0 : index
    %36 = vector.load %arg5[%c0_42, %c0_43] : memref<2x296xf32, #tpu.memory_space<vmem>>, vector<2x264xf32>
    %c0_44 = arith.constant 0 : index
    %c32_45 = arith.constant 32 : index
    %37 = vector.load %arg5[%c0_44, %c32_45] : memref<2x296xf32, #tpu.memory_space<vmem>>, vector<2x264xf32>
    %38 = arith.addf %36, %37 : vector<2x264xf32>
    %c0_46 = arith.constant 0 : index
    %c0_47 = arith.constant 0 : index
    %39 = vector.load %arg4[%c0_46, %c0_47] : memref<2x312xf32, #tpu.memory_space<vmem>>, vector<2x264xf32>
    tpu.vector_store %arg4[%c0_46, %c0_47], %38 {strides = array<i32>} : memref<2x312xf32, #tpu.memory_space<vmem>>, vector<2x264xf32>,
    %c0_48 = arith.constant 0 : index
    %c8_49 = arith.constant 8 : index
    %40 = vector.load %arg4[%c0_48, %c8_49] : memref<2x312xf32, #tpu.memory_space<vmem>>, vector<2x128xf32>
    %c0_50 = arith.constant 0 : index
    %c0_51 = arith.constant 0 : index
    %41 = vector.load %arg2[%c0_50, %c0_51] : memref<2x128xf32, #tpu.memory_space<vmem>>, vector<2x128xf32>
    tpu.vector_store %arg2[%c0_50, %c0_51], %40 {strides = array<i32>} : memref<2x128xf32, #tpu.memory_space<vmem>>, vector<2x128xf32>,
    %c0_52 = arith.constant 0 : index
    %c72_53 = arith.constant 72 : index
    %42 = vector.load %arg4[%c0_52, %c72_53] : memref<2x312xf32, #tpu.memory_space<vmem>>, vector<2x128xf32>
    %c0_54 = arith.constant 0 : index
    %c136 = arith.constant 136 : index
    %43 = vector.load %arg4[%c0_54, %c136] : memref<2x312xf32, #tpu.memory_space<vmem>>, vector<2x128xf32>
    %44 = arith.addf %42, %43 : vector<2x128xf32>
    %c0_55 = arith.constant 0 : index
    %c0_56 = arith.constant 0 : index
    %45 = vector.load %arg2[%c0_55, %c0_56] : memref<2x128xf32, #tpu.memory_space<vmem>>, vector<2x128xf32>
    %46 = arith.addf %45, %44 : vector<2x128xf32>
    %c0_57 = arith.constant 0 : index
    %c0_58 = arith.constant 0 : index
    %47 = vector.load %arg2[%c0_57, %c0_58] : memref<2x128xf32, #tpu.memory_space<vmem>>, vector<2x128xf32>
    tpu.vector_store %arg2[%c0_57, %c0_58], %46 {strides = array<i32>} : memref<2x128xf32, #tpu.memory_space<vmem>>, vector<2x128xf32>,
    %c0_59 = arith.constant 0 : index
    %c0_60 = arith.constant 0 : index
    %48 = vector.load %arg3[%c0_59, %c0_60] : memref<2x320xf32, #tpu.memory_space<vmem>>, vector<2x128xf32>
    %c0_61 = arith.constant 0 : index
    %c0_62 = arith.constant 0 : index
    %49 = vector.load %arg2[%c0_61, %c0_62] : memref<2x128xf32, #tpu.memory_space<vmem>>, vector<2x128xf32>
    %50 = arith.addf %49, %48 : vector<2x128xf32>
    %cst = arith.constant 4.000000e-02 : f32
    %51 = vector.broadcast %cst : f32 to vector<2x128xf32>
    %52 = arith.mulf %50, %51 : vector<2x128xf32>
    %c0_63 = arith.constant 0 : index
    %c0_64 = arith.constant 0 : index
    %53 = vector.load %arg2[%c0_63, %c0_64] : memref<2x128xf32, #tpu.memory_space<vmem>>, vector<2x128xf32>
    tpu.vector_store %arg2[%c0_63, %c0_64], %52 {strides = array<i32>} : memref<2x128xf32, #tpu.memory_space<vmem>>, vector<2x128xf32>,
    return
  }
  func.func @transform_0(%arg0: i32) -> (i32, i32) {
    %c0_i32 = arith.constant 0 : i32
    %c0_i32_0 = arith.constant 0 : i32
    return %arg0, %c0_i32 : i32, i32
  }
  func.func @transform_1(%arg0: i32) -> (i32, i32) {
    %c0_i32 = arith.constant 0 : i32
    %c0_i32_0 = arith.constant 0 : i32
    return %arg0, %c0_i32 : i32, i32
  }
}

</mosaic_0001>

<llo_original>
// kernel: moving_avg.1
$region0: #{moving_avg.1}
  #allocation0 [shape = 'u32[]', space=smem, size = 0x4, offset = 0x4, fixed_abs, tag = 'smem constant byte address 0x4 - core index']
  #allocation1 [shape = 'u32[144,128]{1,0:T(1,128)}', space=vmem, size = 0x12000, scoped, tag = 'internal scratch']
  #allocation2 [shape = 'f32[2,320]{1,0:T(2,128)}', space=vmem, size = 0xc00, scoped, tag = 'scratch operand']
  #allocation3 [shape = 'f32[2,312]{1,0:T(2,128)}', space=vmem, size = 0xc00, scoped, tag = 'scratch operand']
  #allocation4 [shape = 'f32[2,296]{1,0:T(2,128)}', space=vmem, size = 0xc00, scoped, tag = 'scratch operand']
  %s0 = inlined_call_operand.vmem [shape: f32[2,128], index: 0, kind: input, shape index: {}]
  %s1 = inlined_call_operand.vmem [shape: f32[2,128], index: 1, kind: output, shape index: {}]
  %s2 = sld [smem:[#allocation0]]
  $region14: #{moving_avg.1} parent=0
    _
  %s4 = ssub.s32 1, %s2
  %s5 = scalar_select 0, %s4, %s2
  // Predicated region
  $region2: #{moving_avg.1} parent=0 // pred_check
    _
  $region3: #{moving_avg.1} parent=0 // pred_check_branch
    %7 = sbr.rel (0) target = $region5
  $region4: #{moving_avg.1} parent=0 // pred_region
    _
  $region5: #{moving_avg.1} parent=0 // pred_fallthru
    _
  %v8 = vld [vmem:[%s0] sm:$0x3]
  %v11 = vunpack.c.l.s4 1983009808
  %v12 = vunpack.c.0.s8 %v11
  %v13 = vlaneseq
  %v14 = vshrl.u32 %v13, 7
  %v15 = vsub.s32 %v12, %v14
  %v16 = vrot.slane %v8, %v15
  %17 = vrot.lane.b32.xlu0 %v16, 96
  %v18 = vpop.permute.xlu0 %17
  %v19 = vrot.slane %v18, 6
  %vm20 = vcmask 785408
  %v21 = vsel %vm20, %v19, %v18
  %vm23 = vcmask 1042176
  %vm24 = vcmask 781314
  %vm25 = vmor %vm24, %vm23
  %26 = vst.msk [vmem:[#allocation2] sm:$0xf] %vm25, %v21
  %v27 = vld [vmem:[%s0] sm:$0x3]
  %vm28 = vcmask 58368
  %29 = vst.msk [vmem:[#allocation2] sm:$0x3] %vm28, %v27
  %v32 = vunpack.c.l.s4 1983009808
  %v33 = vunpack.c.0.s8 %v32
  %v34 = vlaneseq
  %v35 = vshrl.u32 %v34, 7
  %v36 = vsub.s32 %v33, %v35
  %v37 = vrot.slane %v27, %v36
  %38 = vrot.lane.b32.xlu0 %v37, 104
  %v39 = vpop.permute.xlu0 %38
  %vm41 = vcmask 845568
  %42 = vst.msk [vmem:[#allocation2 + $0x2] sm:$0x3] %vm41, %v39
  %43 = vrot.lane.b32.xlu0 %v37, 8
  %v44 = vpop.permute.xlu0 %43
  %vm46 = vcmask 123968
  %47 = vst.msk [vmem:[#allocation2] sm:$0x3] %vm46, %v44
  %48 = vrot.lane.b32.xlu0 %v37, 112
  %v49 = vpop.permute.xlu0 %48
  %vm51 = vcmask 911168
  %52 = vst.msk [vmem:[#allocation2 + $0x2] sm:$0x3] %vm51, %v49
  %53 = vrot.lane.b32.xlu0 %v37, 16
  %v54 = vpop.permute.xlu0 %53
  %vm56 = vcmask 189568
  %57 = vst.msk [vmem:[#allocation2] sm:$0x3] %vm56, %v54
  %58 = vrot.lane.b32.xlu0 %v37, 120
  %v59 = vpop.permute.xlu0 %58
  %vm61 = vcmask 976768
  %62 = vst.msk [vmem:[#allocation2 + $0x2] sm:$0x3] %vm61, %v59
  %63 = vrot.lane.b32.xlu0 %v37, 24
  %v64 = vpop.permute.xlu0 %63
  %vm66 = vcmask 255168
  %67 = vst.msk [vmem:[#allocation2] sm:$0x3] %vm66, %v64
  %vm68 = vcmask 1042368
  %69 = vst.msk [vmem:[#allocation2 + $0x2] sm:$0x3] %vm68, %v27
  %70 = vrot.lane.b32.xlu0 %v37, 32
  %v71 = vpop.permute.xlu0 %70
  %vm73 = vcmask 320768
  %74 = vst.msk [vmem:[#allocation2] sm:$0x3] %vm73, %v71
  %75 = vst.msk [vmem:[#allocation2 + $0x4] sm:$0x3] %vm28, %v44
  %76 = vrot.lane.b32.xlu0 %v37, 40
  %v77 = vpop.permute.xlu0 %76
  %vm79 = vcmask 386368
  %80 = vst.msk [vmem:[#allocation2] sm:$0x3] %vm79, %v77
  %81 = vst.msk [vmem:[#allocation2 + $0x4] sm:$0x3] %vm46, %v54
  %82 = vrot.lane.b32.xlu0 %v37, 48
  %v83 = vpop.permute.xlu0 %82
  %vm85 = vcmask 451968
  %86 = vst.msk [vmem:[#allocation2] sm:$0x3] %vm85, %v83
  %87 = vst.msk [vmem:[#allocation2 + $0x4] sm:$0x3] %vm56, %v64
  %88 = vrot.lane.b32.xlu0 %v37, 56
  %v89 = vpop.permute.xlu0 %88
  %vm91 = vcmask 517568
  %92 = vst.msk [vmem:[#allocation2] sm:$0x3] %vm91, %v89
  %93 = vst.msk [vmem:[#allocation2 + $0x4] sm:$0x3] %vm66, %v71
  %94 = vrot.lane.b32.xlu0 %v37, 64
  %v95 = vpop.permute.xlu0 %94
  %vm97 = vcmask 583168
  %98 = vst.msk [vmem:[#allocation2] sm:$0x3] %vm97, %v95
  %99 = vst.msk [vmem:[#allocation2 + $0x4] sm:$0x3] %vm73, %v77
  %100 = vrot.lane.b32.xlu0 %v37, 72
  %v101 = vpop.permute.xlu0 %100
  %vm103 = vcmask 648768
  %104 = vst.msk [vmem:[#allocation2] sm:$0x3] %vm103, %v101
  %105 = vst.msk [vmem:[#allocation2 + $0x4] sm:$0x3] %vm79, %v83
  %106 = vrot.lane.b32.xlu0 %v37, 80
  %v107 = vpop.permute.xlu0 %106
  %vm109 = vcmask 714368
  %110 = vst.msk [vmem:[#allocation2] sm:$0x3] %vm109, %v107
  %111 = vst.msk [vmem:[#allocation2 + $0x4] sm:$0x3] %vm85, %v89
  %112 = vrot.lane.b32.xlu0 %v37, 88
  %v113 = vpop.permute.xlu0 %112
  %vm115 = vcmask 779968
  %116 = vst.msk [vmem:[#allocation2] sm:$0x3] %vm115, %v113
  %117 = vst.msk [vmem:[#allocation2 + $0x4] sm:$0x3] %vm91, %v95
  %v118 = vld [vmem:[#allocation2] sm:$0x3f]
  %120 = vrot.lane.b32.xlu0 %v118, 120
  %v121 = vpop.permute.xlu0 %120
  %v122 = vrot.slane %v121, 2
  %vm123 = vcmask 982016
  %v124 = vsel %vm123, %v121, %v122
  %v126 = vadd.f32 %v118, %v124
  %vm127 = vcmask 1041408
  %vm128 = vcmask 1043458
  %vm129 = vmor %vm128, %vm127
  %vm130 = vcmask 455684
  %vm131 = vmor %vm130, %vm129
  %132 = vst.msk [vmem:[#allocation3] sm:$0x3f] %vm131, %v126
  %v133 = vld [vmem:[#allocation3] sm:$0x3f]
  %135 = vrot.lane.b32.xlu0 %v133, 112
  %v136 = vpop.permute.xlu0 %135
  %v137 = vrot.slane %v136, 2
  %vm138 = vcmask 916480
  %v139 = vsel %vm138, %v136, %v137
  %v141 = vadd.f32 %v133, %v139
  %vm142 = vcmask 324612
  %vm143 = vmor %vm142, %vm129
  %144 = vst.msk [vmem:[#allocation4] sm:$0x3f] %vm143, %v141
  %v145 = vld [vmem:[#allocation4] sm:$0x3f]
  %147 = vrot.lane.b32.xlu0 %v145, 96
  %v148 = vpop.permute.xlu0 %147
  %v149 = vrot.slane %v148, 2
  %v150 = vsel %vm20, %v148, %v149
  %v152 = vadd.f32 %v145, %v150
  %vm153 = vcmask 62468
  %vm154 = vmor %vm153, %vm129
  %155 = vst.msk [vmem:[#allocation3] sm:$0x3f] %vm154, %v152
  %v156 = vld [vmem:[#allocation3] sm:$0xf]
  %v159 = vunpack.c.l.s4 1983009808
  %v160 = vunpack.c.0.s8 %v159
  %v161 = vlaneseq
  %v162 = vshrl.u32 %v161, 7
  %v163 = vsub.s32 %v160, %v162
  %v164 = vrot.slane %v156, %v163
  %v165 = vcombine.high %v164, %v164
  %166 = vrot.lane.b32.xlu0 %v164, 120
  %v167 = vpop.permute.xlu0 %166
  %168 = vrot.lane.b32.xlu0 %v165, 120
  %v169 = vpop.permute.xlu0 %168
  %v170 = vsel %vm123, %v167, %v169
  %172 = vst [vmem:[%s1] sm:$0x3] %v170
  %v173 = vld [vmem:[#allocation3] sm:$0xf]
  %v174 = vld [vmem:[#allocation3 + $0x2] sm:$0xf]
  %176 = vrot.lane.b32.xlu0 %v174, 64
  %v177 = vpop.permute.xlu0 %176
  %v178 = vrot.slane %v177, 6
  %vm179 = vcmask 523264
  %v180 = vsel %vm179, %v178, %v177
  %v182 = vadd.f32 %v173, %v180
  %v183 = vld [vmem:[%s1] sm:$0x3]
  %v186 = vunpack.c.l.s4 1983009808
  %v187 = vunpack.c.0.s8 %v186
  %v188 = vlaneseq
  %v189 = vshrl.u32 %v188, 7
  %v190 = vsub.s32 %v187, %v189
  %v191 = vrot.slane %v182, %v190
  %v192 = vcombine.high %v191, %v191
  %193 = vrot.lane.b32.xlu0 %v191, 56
  %v194 = vpop.permute.xlu0 %193
  %195 = vrot.lane.b32.xlu0 %v192, 56
  %v196 = vpop.permute.xlu0 %195
  %vm197 = vcmask 457728
  %v198 = vsel %vm197, %v194, %v196
  %v200 = vadd.f32 %v183, %v198
  %201 = vst [vmem:[%s1] sm:$0x3] %v200
  %v202 = vld [vmem:[#allocation2] sm:$0x3]
  %v203 = vld [vmem:[%s1] sm:$0x3]
  %v204 = vadd.f32 %v203, %v202
  %v205 = vmul.f32 %v204, 0.04
  %206 = vst [vmem:[%s1] sm:$0x3] %v205
  // Predicated region
  $region6: #{moving_avg.1} parent=0 // pred_check
    _
  $region7: #{moving_avg.1} parent=0 // pred_check_branch
    %208 = sbr.rel (0) target = $region9
  $region8: #{moving_avg.1} parent=0 // pred_region
    _
  $region9: #{moving_avg.1} parent=0 // pred_fallthru
    _
  // Predicated region
  $region10: #{moving_avg.1} parent=0 // pred_check
    _
  $region11: #{moving_avg.1} parent=0 // pred_check_branch
    %210 = sbr.rel (0) target = $region13
  $region12: #{moving_avg.1} parent=0 // pred_region
    _
  $region13: #{moving_avg.1} parent=0 // pred_fallthru
    _

</llo_original>
